<compile_context>
chip_gen: v5e
topology: v5e:2x2
jax: 0.10.0
libtpu: 0.0.40
codegen_flags: <defaults>
</compile_context>

<pallas_src>
import functools

import jax
import jax.numpy as jnp
import numpy as np
from jax import lax
from jax.experimental import pallas as pl
from jax.experimental.pallas import tpu as pltpu


def _hetconv_kernel(x_ref, w_ref, o_ref, *, K, use_roll):
    """One batch-block of the fused HetConv.

    x_ref: (1, C_in, W)       channel-major, per-batch-element self-contained halo segments
    w_ref: (C_out, K * C_in)  im2col weight (grouped block-diagonal, pwc folded into centre tap)
    o_ref: (1, C_out, W)      bf16 output; only the first NB*Lseg columns are meaningful
    """
    xw = x_ref[0]                           # (C_in, W) bf16
    W = xw.shape[-1]

    # Stack the K taps along the contraction (sublane) axis.  Tap k needs column t+k; the
    # per-element slack columns + trailing 128-pad make the rotate wraparound harmless.
    parts = [xw]
    for k in range(1, K):
        if use_roll:
            parts.append(pltpu.roll(xw, shift=W - k, axis=1))   # XLU slot (== jnp.roll(x, -k))
        else:
            parts.append(jnp.roll(xw, shift=-k, axis=1))        # slice+concat fallback
    x_stack = jnp.concatenate(parts, axis=0)                    # (K*C_in, W)

    acc = jnp.dot(w_ref[...], x_stack, preferred_element_type=jnp.float32)
    o_ref[0] = acc.astype(o_ref.dtype)


@functools.lru_cache(maxsize=None)
def _roll_ok():
    """True iff pltpu.roll lowers on this backend and matches jnp.roll semantics."""
    try:
        def probe(x_ref, o_ref):
            o_ref[...] = pltpu.roll(x_ref[...], shift=128 - 3, axis=1)

        x = jnp.broadcast_to(jnp.arange(128, dtype=jnp.float32), (8, 128)).astype(jnp.bfloat16)
        y = pl.pallas_call(probe, out_shape=jax.ShapeDtypeStruct((8, 128), jnp.bfloat16))(x)
        return bool(jnp.array_equal(y, jnp.roll(x, -3, axis=1)))
    except Exception:
        return False


def hetconv1d_pallas(x, w_gwc, w_pwc, *, groups=4, padding=2,
                     compute_dtype=jnp.bfloat16):
    """HetConv1d forward: conv1d(x, w_gwc, groups, padding) + conv1d(x, w_pwc, k=1).

    x: (N, C_in, L); w_gwc: (C_out, C_in//groups, K); w_pwc: (C_out, C_in, 1).
    Returns (N, C_out, L) in x.dtype.
    """
    N, C_in, L = x.shape
    C_out, cin_per_g, K = w_gwc.shape
    cout_per_g = C_out // groups
    assert 2 * padding == K - 1, "padding must keep output length == input length"
    assert C_in == cin_per_g * groups and C_out == cout_per_g * groups

    # ---- weight glue: block-diagonal dense per tap, pwc folded into centre tap,
    #      then flattened into a single (C_out, K*C_in) im2col weight -------------------
    wg = jnp.zeros((K, C_out, C_in), dtype=jnp.float32)
    for g in range(groups):
        blk = jnp.transpose(
            w_gwc[g * cout_per_g:(g + 1) * cout_per_g].astype(jnp.float32), (2, 0, 1))
        wg = wg.at[:, g * cout_per_g:(g + 1) * cout_per_g,
                   g * cin_per_g:(g + 1) * cin_per_g].set(blk)
    wg = wg.at[padding].add(w_pwc[:, :, 0].astype(jnp.float32))   # x == x_pad[..., pad:pad+L]
    w_stack = jnp.transpose(wg, (1, 0, 2)).reshape(C_out, K * C_in).astype(compute_dtype)

    # ---- block sizing: generation-aware VMEM budget, big lane-dense blocks ------------
    Lseg = L + 2 * padding + (K - 1)          # per-element segment: halo + K-1 slack cols
    try:
        vmem_cap = int(getattr(pltpu.get_tpu_info(), "vmem_capacity_bytes",
                               64 * 1024 * 1024))
    except Exception:
        vmem_cap = 64 * 1024 * 1024           # conservative (v7x per-TC) fallback
    # per-lane VMEM bytes: dbl-buffered bf16 in/out, f32 acc, bf16 im2col scratch, slack
    bytes_per_lane = 4 * C_in + 8 * C_out + 2 * K * C_in + 16
    target_lanes = int(min(32 * 1024, max(1024, (vmem_cap * 2 // 5) // bytes_per_lane)))

    NB = max(1, min(N, target_lanes // Lseg))     # batch elements fused per grid step
    NBlk = -(-N // NB)
    if NBlk < 2 and N >= 2:                       # >= 2 parallel grid steps for v7x's 2 TCs
        NB = -(-N // 2)
        NBlk = -(-N // NB)
    N_pad = NBlk * NB
    Win = NB * Lseg
    Win_pad = -(-Win // 128) * 128                # lane-dense (unmasked) stores, aligned rolls

    # ---- input glue: channel-major, each batch element carries its own halo -----------
    xt = jnp.transpose(x, (1, 0, 2))                                         # (C_in, N, L)
    xt = jnp.pad(xt, ((0, 0), (0, N_pad - N), (padding, padding + K - 1)))   # (C_in, N_pad, Lseg)
    xblk = jnp.transpose(xt.reshape(C_in, NBlk, Win), (1, 0, 2))             # (NBlk, C_in, Win)
    xblk = jnp.pad(xblk, ((0, 0), (0, 0), (0, Win_pad - Win))).astype(compute_dtype)

    blk_bytes = (Win_pad * (4 * C_in + 8 * C_out + 2 * K * C_in)
                 + 4 * C_out * K * C_in + (1 << 20))
    vmem_limit = int(min(min(vmem_cap * 17 // 20, 100 * 1024 * 1024),
                         max(8 * 1024 * 1024, 2 * blk_bytes)))

    out = pl.pallas_call(
        functools.partial(_hetconv_kernel, K=K, use_roll=_roll_ok()),
        out_shape=jax.ShapeDtypeStruct((NBlk, C_out, Win_pad), compute_dtype),
        grid_spec=pltpu.PrefetchScalarGridSpec(
            num_scalar_prefetch=0,
            grid=(NBlk,),
            in_specs=[
                pl.BlockSpec((1, C_in, Win_pad), lambda b: (b, 0, 0)),
                pl.BlockSpec((C_out, K * C_in), lambda b: (0, 0)),
            ],
            out_specs=pl.BlockSpec((1, C_out, Win_pad), lambda b: (b, 0, 0)),
        ),
        compiler_params=pltpu.CompilerParams(
            dimension_semantics=("parallel",),
            vmem_limit_bytes=vmem_limit,
        ),
    )(xblk, w_stack)

    # ---- layout-only output glue: drop pad, reshape, static slice (no gather) ---------
    out = out[:, :, :Win].reshape(NBlk, C_out, NB, Lseg)[..., :L]    # (NBlk, C_out, NB, L)
    out = jnp.transpose(out, (0, 2, 1, 3)).reshape(N_pad, C_out, L)
    return out[:N].astype(x.dtype)


def hetconv1d_reference(x, w_gwc, w_pwc, *, groups=4, padding=2):
    """Plain-JAX reference matching PyTorch HetConv1d.forward."""
    dn = ("NCH", "OIH", "NCH")
    gwc = lax.conv_general_dilated(
        x, w_gwc, window_strides=(1,), padding=[(padding, padding)],
        feature_group_count=groups, dimension_numbers=dn,
        precision=lax.Precision.HIGHEST)
    pwc = lax.conv_general_dilated(
        x, w_pwc, window_strides=(1,), padding=[(0, 0)], dimension_numbers=dn,
        precision=lax.Precision.HIGHEST)
    return gwc + pwc


if __name__ == "__main__":
    def run_case(N, C_in, C_out, L, groups=4, K=5, padding=2):
        key = jax.random.PRNGKey(0)
        kx, kg, kp = jax.random.split(key, 3)
        x = jax.random.normal(kx, (N, C_in, L), dtype=jnp.float32)
        w_gwc = jax.random.normal(kg, (C_out, C_in // groups, K), dtype=jnp.float32) * 0.1
        w_pwc = jax.random.normal(kp, (C_out, C_in, 1), dtype=jnp.float32) * 0.1

        out = jax.block_until_ready(
            hetconv1d_pallas(x, w_gwc, w_pwc, groups=groups, padding=padding))

        # Kernel uses bf16 inputs/weights/output with f32 accumulation; compare against a
        # reference fed the same bf16-rounded inputs (residual diff = fold + output rounding).
        rt = lambda a: a.astype(jnp.bfloat16).astype(jnp.float32)
        ref = hetconv1d_reference(rt(x), rt(w_gwc), rt(w_pwc),
                                  groups=groups, padding=padding)
        np.testing.assert_allclose(np.asarray(out, dtype=np.float32), np.asarray(ref),
                                   rtol=2e-2, atol=2e-2)

    # Small shapes consistent with the module (NCW input, groups=4).
    run_case(N=2, C_in=8, C_out=8, L=16)       # exercises the forced 2-step parallel grid
    run_case(N=5, C_in=16, C_out=32, L=33)     # exercises fused multi-element blocks + padding
    print("KERNEL_OK")
</pallas_src>

<mosaic_0001>
module attributes {stable_mosaic.version = 11 : i64} {
  func.func @probe(%arg0: memref<8x128xbf16, #tpu.memory_space<vmem>>, %arg1: memref<8x128xbf16, #tpu.memory_space<vmem>>) attributes {dimension_semantics = [], scalar_prefetch = 0 : i64, scratch_operands = 0 : i64, tpu.core_type = #tpu.core_type<tc>} {
    %c0 = arith.constant 0 : index
    %c0_0 = arith.constant 0 : index
    %0 = vector.load %arg0[%c0, %c0_0] : memref<8x128xbf16, #tpu.memory_space<vmem>>, vector<8x128xbf16>
    %c125_i32 = arith.constant 125 : i32
    %1 = tpu.dynamic_rotate %0 by %c125_i32 dim 1 : vector<8x128xbf16>, i32 -> vector<8x128xbf16>
    %c0_1 = arith.constant 0 : index
    %c0_2 = arith.constant 0 : index
    %2 = vector.load %arg1[%c0_1, %c0_2] : memref<8x128xbf16, #tpu.memory_space<vmem>>, vector<8x128xbf16>
    tpu.vector_store %arg1[%c0_1, %c0_2], %1 {strides = array<i32>} : memref<8x128xbf16, #tpu.memory_space<vmem>>, vector<8x128xbf16>,
    return
  }
}

module attributes {stable_mosaic.version = 11 : i64} {
  func.func @_hetconv_kernel(%arg0: i32, %arg1: memref<1x8x128xbf16, #tpu.memory_space<vmem>>, %arg2: memref<8x40xbf16, #tpu.memory_space<vmem>>, %arg3: memref<1x8x128xbf16, #tpu.memory_space<vmem>>) attributes {dimension_semantics = [#tpu.dimension_semantics<parallel>], iteration_bounds = array<i64: 2>, scalar_prefetch = 0 : i64, scratch_operands = 0 : i64, tpu.core_type = #tpu.core_type<tc>, window_params = [{transform_indices = @transform_0, window_bounds = array<i64: 1, 8, 128>}, {pipeline_mode = #tpu.pipeline_mode<synchronous>, transform_indices = @transform_1, window_bounds = array<i64: 8, 40>}, {transform_indices = @transform_2, window_bounds = array<i64: 1, 8, 128>}]} {
    %c0 = arith.constant 0 : index
    %c0_0 = arith.constant 0 : index
    %c0_1 = arith.constant 0 : index
    %0 = vector.load %arg1[%c0, %c0_0, %c0_1] : memref<1x8x128xbf16, #tpu.memory_space<vmem>>, vector<1x8x128xbf16>
    %1 = vector.shape_cast %0 : vector<1x8x128xbf16> to vector<8x128xbf16>
    %2 = vector.extract_strided_slice %1 {offsets = [0, 1], sizes = [8, 127], strides = [1, 1]} : vector<8x128xbf16> to vector<8x127xbf16>
    %3 = vector.extract_strided_slice %1 {offsets = [0, 0], sizes = [8, 1], strides = [1, 1]} : vector<8x128xbf16> to vector<8x1xbf16>
    %4 = tpu.concatenate %2, %3 in 1 : vector<8x127xbf16>, vector<8x1xbf16> -> vector<8x128xbf16>
    %5 = vector.extract_strided_slice %1 {offsets = [0, 2], sizes = [8, 126], strides = [1, 1]} : vector<8x128xbf16> to vector<8x126xbf16>
    %6 = vector.extract_strided_slice %1 {offsets = [0, 0], sizes = [8, 2], strides = [1, 1]} : vector<8x128xbf16> to vector<8x2xbf16>
    %7 = tpu.concatenate %5, %6 in 1 : vector<8x126xbf16>, vector<8x2xbf16> -> vector<8x128xbf16>
    %8 = vector.extract_strided_slice %1 {offsets = [0, 3], sizes = [8, 125], strides = [1, 1]} : vector<8x128xbf16> to vector<8x125xbf16>
    %9 = vector.extract_strided_slice %1 {offsets = [0, 0], sizes = [8, 3], strides = [1, 1]} : vector<8x128xbf16> to vector<8x3xbf16>
    %10 = tpu.concatenate %8, %9 in 1 : vector<8x125xbf16>, vector<8x3xbf16> -> vector<8x128xbf16>
    %11 = vector.extract_strided_slice %1 {offsets = [0, 4], sizes = [8, 124], strides = [1, 1]} : vector<8x128xbf16> to vector<8x124xbf16>
    %12 = vector.extract_strided_slice %1 {offsets = [0, 0], sizes = [8, 4], strides = [1, 1]} : vector<8x128xbf16> to vector<8x4xbf16>
    %13 = tpu.concatenate %11, %12 in 1 : vector<8x124xbf16>, vector<8x4xbf16> -> vector<8x128xbf16>
    %14 = tpu.concatenate %1, %4, %7, %10, %13 in 0 : vector<8x128xbf16>, vector<8x128xbf16>, vector<8x128xbf16>, vector<8x128xbf16>, vector<8x128xbf16> -> vector<40x128xbf16>
    %c0_2 = arith.constant 0 : index
    %c0_3 = arith.constant 0 : index
    %15 = vector.load %arg2[%c0_2, %c0_3] : memref<8x40xbf16, #tpu.memory_space<vmem>>, vector<8x40xbf16>
    %cst = arith.constant dense<0.000000e+00> : vector<8x128xf32>
    %16 = tpu.matmul %15, %14, %cst {dimension_numbers = #tpu.dot_dimension_numbers<[1], [0], [0], [1], [0, 0, 1, 1], [], []>} : vector<8x40xbf16>, vector<40x128xbf16>, vector<8x128xf32> -> vector<8x128xf32>
    %17 = arith.truncf %16 : vector<8x128xf32> to vector<8x128xbf16>
    %c0_4 = arith.constant 0 : index
    %c0_5 = arith.constant 0 : index
    %c0_6 = arith.constant 0 : index
    %18 = vector.load %arg3[%c0_4, %c0_5, %c0_6] : memref<1x8x128xbf16, #tpu.memory_space<vmem>>, vector<1x8x128xbf16>
    %19 = vector.shape_cast %18 : vector<1x8x128xbf16> to vector<8x128xbf16>
    %20 = vector.shape_cast %17 : vector<8x128xbf16> to vector<1x8x128xbf16>
    tpu.vector_store %arg3[%c0_4, %c0_5, %c0_6], %20 {strides = array<i32>} : memref<1x8x128xbf16, #tpu.memory_space<vmem>>, vector<1x8x128xbf16>,
    return
  }
  func.func @transform_0(%arg0: i32) -> (i32, i32, i32) {
    %c0_i32 = arith.constant 0 : i32
    %c0_i32_0 = arith.constant 0 : i32
    %c0_i32_1 = arith.constant 0 : i32
    return %arg0, %c0_i32, %c0_i32_0 : i32, i32, i32
  }
  func.func @transform_1(%arg0: i32) -> (i32, i32) {
    %c0_i32 = arith.constant 0 : i32
    %c0_i32_0 = arith.constant 0 : i32
    %c0_i32_1 = arith.constant 0 : i32
    return %c0_i32, %c0_i32_0 : i32, i32
  }
  func.func @transform_2(%arg0: i32) -> (i32, i32, i32) {
    %c0_i32 = arith.constant 0 : i32
    %c0_i32_0 = arith.constant 0 : i32
    %c0_i32_1 = arith.constant 0 : i32
    return %arg0, %c0_i32, %c0_i32_0 : i32, i32, i32
  }
}

</mosaic_0001>

<llo_original>
// kernel: tpu_custom_call.1
$region0: #{tpu_custom_call.1}
  #allocation0 [shape = 'u32[]', space=smem, size = 0x4, offset = 0x4, fixed_abs, tag = 'smem constant byte address 0x4 - core index']
  #allocation1 [shape = 'u32[72,128]{1,0:T(1,128)}', space=vmem, size = 0x9000, scoped, tag = 'internal scratch']
  %s0 = inlined_call_operand.hbm [shape: bf16[2,8,128], index: 0, kind: input, shape index: {}]
  %s1 = inlined_call_operand.hbm [shape: bf16[8,40], index: 1, kind: input, shape index: {}]
  %s2 = inlined_call_operand.hbm [shape: bf16[2,8,128], index: 2, kind: output, shape index: {}]
  %s3 = sld [smem:[#allocation0]]
  $region49: #{tpu_custom_call.1} parent=0
    _
  %s5 = ssub.s32 1, %s3
  %s6 = scalar_select 0, %s5, %s3
  $region1: #{tpu_custom_call.1} parent=0
    #allocation2 [shape = 'u8[4096]{0}', space=vmem, size = 0x1000, scoped, tag = 'input window, operand 0']
    #allocation3 [shape = 's32[2]{0}', space=sflag, size = 0x8, scoped, tag = 'scoped memory for tpu_custom_call.1']
    #allocation4 [shape = 's32[2]{0}', space=sflag, size = 0x8, scoped, tag = 'scoped memory for tpu_custom_call.1']
    #allocation5 [shape = 'u8[2048]{0}', space=vmem, size = 0x800, scoped, tag = 'input window, operand 1, single buffered']
    #allocation6 [shape = 's32[1]{0}', space=sflag, size = 0x4, scoped, tag = 'scoped memory for tpu_custom_call.1']
    #allocation7 [shape = 'u8[4096]{0}', space=vmem, size = 0x1000, scoped, tag = 'output window, operand 0']
    %7 = vsyncpa [#allocation3], 0
    %s8 = scalar_lea.sflag [#allocation3], 1
    %9 = vsyncpa %s8, 0
    %10 = vsyncpa [#allocation6], 0
    %11 = vsyncpa [#allocation4], 0
    %s12 = scalar_lea.sflag [#allocation4], 1
    %13 = vsyncpa %s12, 0
    loop: start=0, step=1, limit=4
    $region2: #{tpu_custom_call.1} parent=1 // loop_pre_header
      _
    $region3: #{tpu_custom_call.1} parent=1 // loop_header
      %s15 = sphi 0, %s19
      %p16 = scmp.ge.s32.totalorder %s15, 4
      %s25 = sphi 0, %s27
      %s28 = sphi 0, %s25
      %s29 = sphi 0, %s28
      %s45 = sphi 0, %s29
      %s49 = sphi 0, %s49
      %s51 = sphi 0, %s49
      %s52 = sphi 0, %s51
      %s66 = sphi 0, %s52
      %s72 = sphi 0, %s74
      %s75 = sphi 0, %s72
      %s76 = sphi 0, %s75
      %s92 = sphi 0, %s76
    $region4: #{tpu_custom_call.1} parent=1 // loop_header_branch
      %18 = sbr.rel (%p16) target = $region8
    $region5: #{tpu_custom_call.1} parent=1 // loop_body
      %s20 = ssub.s32 %s15, 1
      %s21 = ssub.s32 %s15, 2
      %s22 = sadd.s32 %s15, 1
      %s23 = ssub.s32 %s15, %s22
      %p24 = scmp.eq.s32.totalorder %s23, 0
      %s26 = sadd.s32 %s25, 1
      %s27 = scalar_select %p24, %s25, %s26
      %p30 = pneg %p24
      %p31 = scmp.eq.s32.totalorder %s15, 1
      %p32 = por %p30, %p31
      %p33 = scmp.ne.s32.totalorder %s25, %s28
      %p34 = scmp.eq.s32.totalorder %s15, 0
      %p35 = por %p33, %p34
      %p36 = scmp.ne.s32.totalorder %s25, %s28
      %p37 = scmp.eq.s32.totalorder %s20, 1
      %p38 = por %p36, %p37
      %p39 = scmp.ne.s32.totalorder %s28, %s29
      %p40 = scmp.eq.s32.totalorder %s20, 0
      %p41 = por %p39, %p40
      %p42 = scmp.ne.s32.totalorder %s28, %s29
      %p43 = scmp.eq.s32.totalorder %s21, 1
      %p44 = por %p42, %p43
      %p46 = scmp.ne.s32.totalorder %s29, %s45
      %p47 = scmp.eq.s32.totalorder %s21, 0
      %p48 = por %p46, %p47
      %s50 = sadd.s32 %s49, 1
      %p53 = scmp.eq.s32.totalorder %s15, 1
      %p54 = scmp.ne.s32.totalorder %s49, %s51
      %p55 = scmp.eq.s32.totalorder %s15, 0
      %p56 = por %p54, %p55
      %p57 = scmp.ne.s32.totalorder %s49, %s51
      %p58 = scmp.eq.s32.totalorder %s20, 1
      %p59 = por %p57, %p58
      %p60 = scmp.ne.s32.totalorder %s51, %s52
      %p61 = scmp.eq.s32.totalorder %s20, 0
      %p62 = por %p60, %p61
      %p63 = scmp.ne.s32.totalorder %s51, %s52
      %p64 = scmp.eq.s32.totalorder %s21, 1
      %p65 = por %p63, %p64
      %p67 = scmp.ne.s32.totalorder %s52, %s66
      %p68 = scmp.eq.s32.totalorder %s21, 0
      %p69 = por %p67, %p68
      %s70 = ssub.s32 %s15, %s22
      %p71 = scmp.eq.s32.totalorder %s70, 0
      %s73 = sadd.s32 %s72, 1
      %s74 = scalar_select %p71, %s72, %s73
      %p77 = pneg %p71
      %p78 = scmp.eq.s32.totalorder %s15, 1
      %p79 = por %p77, %p78
      %p80 = scmp.ne.s32.totalorder %s72, %s75
      %p81 = scmp.eq.s32.totalorder %s15, 0
      %p82 = por %p80, %p81
      %p83 = scmp.ne.s32.totalorder %s72, %s75
      %p84 = scmp.eq.s32.totalorder %s20, 1
      %p85 = por %p83, %p84
      %p86 = scmp.ne.s32.totalorder %s75, %s76
      %p87 = scmp.eq.s32.totalorder %s20, 0
      %p88 = por %p86, %p87
      %p89 = scmp.ne.s32.totalorder %s75, %s76
      %p90 = scmp.eq.s32.totalorder %s21, 1
      %p91 = por %p89, %p90
      %p93 = scmp.ne.s32.totalorder %s76, %s92
      %p94 = scmp.eq.s32.totalorder %s21, 0
      %p95 = por %p93, %p94
      %p96 = scmp.le.s32.totalorder 1, %s15
      %p97 = scmp.lt.s32.totalorder %s15, 3
      %p98 = pnand %p96, %p97
      %p99 = pneg %p98
      // Predicated region
      $region9: #{tpu_custom_call.1} parent=5 // pred_check
        _
      $region10: #{tpu_custom_call.1} parent=5 // pred_check_branch
        %101 = sbr.rel (%p98) target = $region12
      $region11: #{tpu_custom_call.1} parent=5 // pred_region
        %s102 = ssub.s32 %s15, 1
        // Predicated region
        $region13: #{tpu_custom_call.1} parent=11 // pred_check
          %p103 = pneg %p62
        $region14: #{tpu_custom_call.1} parent=11 // pred_check_branch
          %105 = sbr.rel (%p103) target = $region16
        $region15: #{tpu_custom_call.1} parent=11 // pred_region
          %107 = vsyncadd [#allocation6], 0
          %s109 = sshll.u32 %s1, 4
          %s110 = int_to_ptr.hbm [resolvable:$true] %s109
          %s111 = sshll.u32 [#allocation5], 4
          %s112 = int_to_ptr.vmem [resolvable:$true] %s111
          %114 = dma.hbm_to_vmem [thread:$0]  %s110, 64, %s112, [#allocation6]
        $region16: #{tpu_custom_call.1} parent=11 // pred_fallthru
          _
      $region12: #{tpu_custom_call.1} parent=5 // pred_fallthru
        _
      %p115 = scmp.lt.s32.totalorder %s15, 2
      // Predicated region
      $region17: #{tpu_custom_call.1} parent=5 // pred_check
        %p116 = pneg %p115
      $region18: #{tpu_custom_call.1} parent=5 // pred_check_branch
        %118 = sbr.rel (%p116) target = $region20
      $region19: #{tpu_custom_call.1} parent=5 // pred_region
        // Predicated region
        $region21: #{tpu_custom_call.1} parent=19 // pred_check
          %p119 = pneg %p35
        $region22: #{tpu_custom_call.1} parent=19 // pred_check_branch
          %121 = sbr.rel (%p119) target = $region24
        $region23: #{tpu_custom_call.1} parent=19 // pred_region
          %s122 = sand.u32 %s25, 1
          %s123 = scalar_lea.sflag [#allocation3], %s122
          %s124 = sand.u32 %s25, 1
          %s125 = smul.addr %s124, 4
          %s126 = scalar_lea.vmem [#allocation2], %s125
          %128 = vsyncadd %s123, 0
          %s129 = smul.addr %s15, 4
          %s130 = scalar_lea.hbm %s0, %s129
          %s132 = sshll.u32 %s130, 4
          %s133 = int_to_ptr.hbm [resolvable:$true] %s132
          %s134 = sshll.u32 %s126, 4
          %s135 = int_to_ptr.vmem [resolvable:$true] %s134
          %137 = dma.hbm_to_vmem [thread:$0]  %s133, 64, %s135, %s123
        $region24: #{tpu_custom_call.1} parent=19 // pred_fallthru
          _
      $region20: #{tpu_custom_call.1} parent=5 // pred_fallthru
        _
      %p138 = scmp.le.s32.totalorder 1, %s15
      %p139 = scmp.lt.s32.totalorder %s15, 3
      %p140 = pnand %p138, %p139
      %p141 = pneg %p140
      // Predicated region
      $region25: #{tpu_custom_call.1} parent=5 // pred_check
        _
      $region26: #{tpu_custom_call.1} parent=5 // pred_check_branch
        %143 = sbr.rel (%p140) target = $region28
      $region27: #{tpu_custom_call.1} parent=5 // pred_region
        %s144 = ssub.s32 %s15, 1
        %s145 = sand.u32 %s28, 1
        %s146 = scalar_lea.sflag [#allocation3], %s145
        %s147 = sand.u32 %s28, 1
        %s148 = smul.addr %s147, 4
        %s149 = scalar_lea.vmem [#allocation2], %s148
        // Predicated region
        $region29: #{tpu_custom_call.1} parent=27 // pred_check
          %p150 = pneg %p41
        $region30: #{tpu_custom_call.1} parent=27 // pred_check_branch
          %152 = sbr.rel (%p150) target = $region32
        $region31: #{tpu_custom_call.1} parent=27 // pred_region
          %154 = dma.done %s146, 64
        $region32: #{tpu_custom_call.1} parent=27 // pred_fallthru
          _
        // Predicated region
        $region33: #{tpu_custom_call.1} parent=27 // pred_check
          %p155 = pneg %p62
        $region34: #{tpu_custom_call.1} parent=27 // pred_check_branch
          %157 = sbr.rel (%p155) target = $region36
        $region35: #{tpu_custom_call.1} parent=27 // pred_region
          %159 = dma.done [#allocation6], 64
        $region36: #{tpu_custom_call.1} parent=27 // pred_fallthru
          _
        %s160 = sand.u32 %s28, 1
        %s161 = scalar_lea.sflag [#allocation3], %s160
        %s162 = sand.u32 %s28, 1
        %s163 = smul.addr %s162, 4
        %s164 = scalar_lea.vmem [#allocation2], %s163
        %p165 = pneg %p41
        %p166 = pneg %p38
        %p167 = pneg %p62
        %p168 = pneg %p59
        %p169 = pneg %p88
        %p170 = pneg %p85
        %s171 = sand.u32 %s75, 1
        %s172 = scalar_lea.sflag [#allocation4], %s171
        %s173 = sand.u32 %s75, 1
        %s174 = smul.addr %s173, 4
        %s175 = scalar_lea.vmem [#allocation7], %s174
        %v177 = vld [vmem:[%s149] sm:$0xf]
        %v179 = vunpack.c.l.b16 %v177
        %v180 = vpack.c.b16 %v179, %v179
        %181 = vrot.lane.b32.xlu0 %v180, 127
        %v182 = vpop.permute.xlu0 %181
        %184 = vrot.lane.b32.xlu0 %v180, 126
        %v185 = vpop.permute.xlu0 %184
        %187 = vrot.lane.b32.xlu0 %v180, 125
        %v188 = vpop.permute.xlu0 %187
        %190 = vrot.lane.b32.xlu0 %v180, 124
        %v191 = vpop.permute.xlu0 %190
        %v194 = vrot.slane %v182, 4
        %v196 = vrot.slane %v188, 4
        %vm197 = vcmask 1043456
        %v200 = vsel %vm197, %v177, %v194
        %v203 = vsel %vm197, %v185, %v196
        %v205 = vld [vmem:[#allocation5] sm:$0xf]
        %vm206 = vcmask 326656
        %v208 = vsel %vm206, %v205, 0
        %v210 = vsel %vm197, %v191, 0
        %212 = vmatpush.bf16.msra.mxu0 0
        %213 = vmatpush.bf16.msra.mxu0 0
        %214 = vmatpush.bf16.msra.mxu0 0
        %215 = vmatpush.bf16.msra.mxu0 0
        %216 = vmatpush.bf16.msra.mxu0 0
        %217 = vmatpush.bf16.msra.mxu0 %v210
        %218 = vmatpush.bf16.msra.mxu0 %v203
        %219 = vmatpush.bf16.msra.mxu0 %v200
        %220 = vmatmul.bf16.gmra.mxu0 %v208
        %v221 = vpop.f32.mrf.mxu0
        %v222 = vadd.f32 0.0, %v221
        %v223 = vpop.f32.mrf.mxu0
        %224 = vdwg.mxu0
        %v225 = vpack.c.bf16 %v222, %v222
        %226 = vst [vmem:[%s175] sm:$0xf] %v225
        %s227 = sand.u32 %s75, 1
        %s228 = scalar_lea.sflag [#allocation4], %s227
        %s229 = sand.u32 %s75, 1
        %s230 = smul.addr %s229, 4
        %s231 = scalar_lea.vmem [#allocation7], %s230
        // Predicated region
        $region37: #{tpu_custom_call.1} parent=27 // pred_check
          %p232 = pneg %p85
        $region38: #{tpu_custom_call.1} parent=27 // pred_check_branch
          %234 = sbr.rel (%p232) target = $region40
        $region39: #{tpu_custom_call.1} parent=27 // pred_region
          %236 = vsyncadd %s228, 0
          %s237 = smul.addr %s20, 4
          %s238 = scalar_lea.hbm %s2, %s237
          %s240 = sshll.u32 %s231, 4
          %s241 = int_to_ptr.vmem [resolvable:$true] %s240
          %s242 = sshll.u32 %s238, 4
          %s243 = int_to_ptr.hbm [resolvable:$true] %s242
          %245 = dma.vmem_to_hbm [thread:$0]  %s241, 64, %s243, %s228
        $region40: #{tpu_custom_call.1} parent=27 // pred_fallthru
          _
      $region28: #{tpu_custom_call.1} parent=5 // pred_fallthru
        _
      %p246 = scmp.le.s32.totalorder 2, %s15
      // Predicated region
      $region41: #{tpu_custom_call.1} parent=5 // pred_check
        %p247 = pneg %p246
      $region42: #{tpu_custom_call.1} parent=5 // pred_check_branch
        %249 = sbr.rel (%p247) target = $region44
      $region43: #{tpu_custom_call.1} parent=5 // pred_region
        %s250 = ssub.s32 %s15, 2
        // Predicated region
        $region45: #{tpu_custom_call.1} parent=43 // pred_check
          %p251 = pneg %p91
        $region46: #{tpu_custom_call.1} parent=43 // pred_check_branch
          %253 = sbr.rel (%p251) target = $region48
        $region47: #{tpu_custom_call.1} parent=43 // pred_region
          %s254 = sand.u32 %s76, 1
          %s255 = scalar_lea.sflag [#allocation4], %s254
          %s256 = sand.u32 %s76, 1
          %s257 = smul.addr %s256, 4
          %s258 = scalar_lea.vmem [#allocation7], %s257
          %260 = dma.done %s255, 64
        $region48: #{tpu_custom_call.1} parent=43 // pred_fallthru
          _
      $region44: #{tpu_custom_call.1} parent=5 // pred_fallthru
        _
    $region6: #{tpu_custom_call.1} parent=1 // loop_footer
      %s19 = sadd.s32 1, %s15
    $region7: #{tpu_custom_call.1} parent=1 // loop_footer_branch
      %14 = sbr.rel target = $region3
    $region8: #{tpu_custom_call.1} parent=1 // loop_exit
      _
    %261 = vsyncpa [#allocation3], 1
    %s262 = scalar_lea.sflag [#allocation3], 1
    %263 = vsyncpa %s262, 1
    %264 = vsyncpa [#allocation6], 1
    %265 = vsyncpa [#allocation4], 1
    %s266 = scalar_lea.sflag [#allocation4], 1
    %267 = vsyncpa %s266, 1

</llo_original>
